<compile_context>
chip_gen: v7x
topology: tpu7x:2x2x1
jax: 0.10.0
libtpu: 0.0.40
codegen_flags: <defaults>
</compile_context>

<pallas_src>
import functools

import jax
import jax.numpy as jnp
from jax.experimental import pallas as pl
from jax.experimental.pallas import tpu as pltpu

EPS = 1e-12
NCORES = 2                              # parallel grid axis (v7x megacore; harmless elsewhere)
TARGET_BLOCK_BYTES = 4 * 1024 * 1024    # ~4 MiB blocks; 2x double-buffered still << VMEM limit


def _entropy_kernel(x_ref, o_ref, acc_ref, *, eps, rows, need_mask):
    # x_ref  : (tm, lanes) VMEM tile of the flattened input (original dtype)
    # o_ref  : (1, 1) SMEM per-core partial sum of x*log(x+eps)
    # acc_ref: (acc_rows, lanes) f32 VMEM vector accumulator
    c = pl.program_id(0)            # "parallel" axis (core split)
    s = pl.program_id(1)            # "arbitrary" reduction axis
    steps = pl.num_programs(1)
    tm, lanes = x_ref.shape

    @pl.when(s == 0)
    def _():
        acc_ref[...] = jnp.zeros_like(acc_ref)

    x = x_ref[...].astype(jnp.float32)      # cast per-tile; HBM traffic stays at input dtype
    ent = x * jnp.log(x + eps)              # log -> EUP, mul -> VALU

    if need_mask:
        # Logical (unclamped) row-block index; masks rows out of range
        # (partial tail block / over-covered blocks of the last core).
        blk = c * steps + s
        row_ids = blk * tm + jax.lax.broadcasted_iota(jnp.int32, (tm, lanes), 0)
        ent = jnp.where(row_ids < rows, ent, 0.0)

    # VALU-only partial accumulation into the vector accumulator
    # (no per-step cross-sublane reduce, no scalar SMEM read-modify-write).
    if tm % 8 == 0:
        acc_ref[...] += jnp.sum(ent.reshape(tm // 8, 8, lanes), axis=0)
    else:
        # tiny-input path (tm == full row count, not 8-divisible): single step
        acc_ref[...] += jnp.sum(ent, axis=0, keepdims=True)

    @pl.when(s == steps - 1)
    def _():
        # single cross-lane reduce per core, once at the end
        o_ref[0, 0] = jnp.sum(acc_ref[...])


def entropy_loss(x, eps=EPS, block_rows=None):
    """x: (B, C, ...) array. Returns scalar float32 entropy loss."""
    assert x.ndim >= 2, "EntropyLoss expects at least 2 dims (dim=1 is reduced)"
    assert x.size > 0, "EntropyLoss is undefined for empty inputs"
    n = x.size
    outer = n // x.shape[1]         # number of entropy terms averaged (B * spatial)
    scale = 1.0 / outer

    flat = x.reshape(-1)            # keep original dtype: no wrapper-side cast copy

    # Lane width that divides numel -> reshape is a free bitcast (no pad copy).
    lanes = None
    for cand in (1024, 512, 256, 128):
        if n % cand == 0:
            lanes = cand
            break
    if lanes is None:
        lanes = 128
        pad = (-n) % lanes
        # Zero padding is exact because 0 * log(0 + eps) == 0 for eps > 0.
        assert eps > 0, "zero-padding the tail requires eps > 0"
        flat = jnp.pad(flat, (0, pad))

    rows = flat.size // lanes
    x2d = flat.reshape(rows, lanes)

    itemsize = x2d.dtype.itemsize
    if block_rows is None:
        tm = max(8, (TARGET_BLOCK_BYTES // (lanes * itemsize)) // 8 * 8)
    else:
        tm = max(8, (block_rows // 8) * 8)
    if rows <= tm:
        tm = rows                   # single row block: full-dim block is always legal
    grid_rows = pl.cdiv(rows, tm)
    ncores = NCORES if grid_rows >= NCORES else 1
    steps = pl.cdiv(grid_rows, ncores)
    acc_rows = 8 if tm % 8 == 0 else 1
    # Masking is only compiled in when the grid does not tile `rows` exactly.
    need_mask = (rows % tm != 0) or (grid_rows % ncores != 0)

    def in_map(c, s):
        # Clamp so over-covered blocks (last core, uneven split) stay in bounds;
        # their contribution is masked to zero inside the kernel.
        return (jnp.minimum(c * steps + s, grid_rows - 1), 0)

    kernel = functools.partial(_entropy_kernel, eps=eps, rows=rows,
                               need_mask=need_mask)

    partials = pl.pallas_call(
        kernel,
        out_shape=jax.ShapeDtypeStruct((ncores, 1), jnp.float32),
        grid_spec=pltpu.PrefetchScalarGridSpec(
            num_scalar_prefetch=0,
            grid=(ncores, steps),
            in_specs=[pl.BlockSpec((tm, lanes), in_map)],
            out_specs=pl.BlockSpec((1, 1), lambda c, s: (c, 0),
                                   memory_space=pltpu.SMEM),
            scratch_shapes=[pltpu.VMEM((acc_rows, lanes), jnp.float32)],
        ),
        compiler_params=pltpu.CompilerParams(
            dimension_semantics=("parallel", "arbitrary"),
            vmem_limit_bytes=32 * 1024 * 1024),
        cost_estimate=pl.CostEstimate(
            flops=3 * n,
            transcendentals=n,
            bytes_accessed=x2d.size * itemsize + ncores * 4),
    )(x2d)

    total = jnp.sum(partials)       # combine per-core partials
    return -total * jnp.float32(scale)


def entropy_loss_ref(x, eps=EPS):
    b = x * jnp.log(x + eps)
    b = -1.0 * b.sum(axis=1)
    return b.mean()


def _check(x, rtol=1e-5, atol=1e-5, **kw):
    out = jax.block_until_ready(entropy_loss(x, **kw))
    ref = jax.block_until_ready(entropy_loss_ref(x))
    assert jnp.allclose(out, ref, rtol=rtol, atol=atol), (out, ref)


if __name__ == "__main__":
    key = jax.random.PRNGKey(0)

    # Primary small test, matching the module's typical NCHW usage
    # (EntropyLoss is applied to softmaxed assignment / attention weights).
    B, C, H, W = 2, 4, 16, 16
    logits = jax.random.normal(key, (B, C, H, W), dtype=jnp.float32)
    x = jax.nn.softmax(logits, axis=1)
    _check(x)

    # Odd shape: exercises the (rare) zero-pad path.
    k1, k2, k3 = jax.random.split(key, 3)
    x_odd = jax.nn.softmax(jax.random.normal(k1, (3, 5, 7, 11), jnp.float32), axis=1)
    _check(x_odd)

    # Larger shape: exercises the single-core, single-block unmasked fast path.
    x_big = jax.nn.softmax(jax.random.normal(k2, (4, 8, 128, 129), jnp.float32), axis=1)
    _check(x_big)

    # Forced small block: exercises multi-block grid, 2-core split, partial
    # tail block and over-covered-block masking.
    x_tail = jax.nn.softmax(jax.random.normal(k3, (2, 4, 12, 128), jnp.float32), axis=1)
    _check(x_tail, block_rows=8)

    print("KERNEL_OK")
</pallas_src>

<mosaic_0001>
module attributes {stable_mosaic.version = 11 : i64} {
  func.func @_entropy_kernel(%arg0: i32, %arg1: i32, %arg2: memref<2x1024xf32, #tpu.memory_space<vmem>>, %arg3: memref<1x1xf32, #tpu.memory_space<smem>>, %arg4: memref<1x1024xf32, #tpu.memory_space<vmem>>) attributes {dimension_semantics = [#tpu.dimension_semantics<parallel>, #tpu.dimension_semantics<arbitrary>], iteration_bounds = array<i64: 1, 1>, scalar_prefetch = 0 : i64, scratch_operands = 1 : i64, tpu.core_type = #tpu.core_type<tc>, window_params = [{transform_indices = @transform_0, window_bounds = array<i64: 2, 1024>}, {transform_indices = @transform_1, window_bounds = array<i64: 1, 1>}]} {
    %c0_i32 = arith.constant 0 : i32
    %0 = arith.cmpi eq, %arg1, %c0_i32 : i32
    %1 = arith.extui %0 : i1 to i32
    %c0_i32_0 = arith.constant 0 : i32
    %2 = arith.cmpi ne, %1, %c0_i32_0 : i32
    scf.if %2 {
      %cst_9 = arith.constant 0.000000e+00 : f32
      %16 = vector.broadcast %cst_9 : f32 to vector<1x1024xf32>
      %c0_10 = arith.constant 0 : index
      %c0_11 = arith.constant 0 : index
      %17 = vector.load %arg4[%c0_10, %c0_11] : memref<1x1024xf32, #tpu.memory_space<vmem>>, vector<1x1024xf32>
      tpu.vector_store %arg4[%c0_10, %c0_11], %16 {strides = array<i32>} : memref<1x1024xf32, #tpu.memory_space<vmem>>, vector<1x1024xf32>,
    } else {
    }
    %c0 = arith.constant 0 : index
    %c0_1 = arith.constant 0 : index
    %3 = vector.load %arg2[%c0, %c0_1] : memref<2x1024xf32, #tpu.memory_space<vmem>>, vector<2x1024xf32>
    %cst = arith.constant 9.99999996E-13 : f32
    %4 = vector.broadcast %cst : f32 to vector<2x1024xf32>
    %5 = arith.addf %3, %4 : vector<2x1024xf32>
    %6 = math.log %5 : vector<2x1024xf32>
    %7 = arith.mulf %3, %6 : vector<2x1024xf32>
    %c0_2 = arith.constant 0 : index
    %c0_3 = arith.constant 0 : index
    %8 = vector.load %arg4[%c0_2, %c0_3] : memref<1x1024xf32, #tpu.memory_space<vmem>>, vector<1x1024xf32>
    %cst_4 = arith.constant dense<0.000000e+00> : vector<1024xf32>
    %9 = vector.multi_reduction <add>, %7, %cst_4 [0] : vector<2x1024xf32> to vector<1024xf32>
    %10 = vector.shape_cast %9 : vector<1024xf32> to vector<1x1024xf32>
    %11 = arith.addf %8, %10 : vector<1x1024xf32>
    %c0_5 = arith.constant 0 : index
    %c0_6 = arith.constant 0 : index
    %12 = vector.load %arg4[%c0_5, %c0_6] : memref<1x1024xf32, #tpu.memory_space<vmem>>, vector<1x1024xf32>
    tpu.vector_store %arg4[%c0_5, %c0_6], %11 {strides = array<i32>} : memref<1x1024xf32, #tpu.memory_space<vmem>>, vector<1x1024xf32>,
    %c0_i32_7 = arith.constant 0 : i32
    %13 = arith.cmpi eq, %arg1, %c0_i32_7 : i32
    %14 = arith.extui %13 : i1 to i32
    %c0_i32_8 = arith.constant 0 : i32
    %15 = arith.cmpi ne, %14, %c0_i32_8 : i32
    scf.if %15 {
      %c0_9 = arith.constant 0 : index
      %c0_10 = arith.constant 0 : index
      %16 = vector.load %arg4[%c0_9, %c0_10] : memref<1x1024xf32, #tpu.memory_space<vmem>>, vector<1x1024xf32>
      %17 = vector.shape_cast %16 : vector<1x1024xf32> to vector<1x1x1024xf32>
      %cst_11 = arith.constant dense<0.000000e+00> : vector<1xf32>
      %18 = vector.multi_reduction <add>, %17, %cst_11 [1, 2] : vector<1x1x1024xf32> to vector<1xf32>
      %19 = vector.shape_cast %18 : vector<1xf32> to vector<1x1x1xf32>
      %20 = vector.extract %19[0, 0, 0] : f32 from vector<1x1x1xf32>
      %c0_12 = arith.constant 0 : index
      %c0_13 = arith.constant 0 : index
      %21 = memref.load %arg3[%c0_12, %c0_13] : memref<1x1xf32, #tpu.memory_space<smem>>
      memref.store %20, %arg3[%c0_12, %c0_13] : memref<1x1xf32, #tpu.memory_space<smem>>
    } else {
    }
    return
  }
  func.func @transform_0(%arg0: i32, %arg1: i32) -> (i32, i32) {
    %c1_i32 = arith.constant 1 : i32
    %0 = arith.muli %arg0, %c1_i32 : i32
    %1 = arith.addi %0, %arg1 : i32
    %c0_i32 = arith.constant 0 : i32
    %2 = arith.minsi %1, %c0_i32 : i32
    %c0_i32_0 = arith.constant 0 : i32
    %c0_i32_1 = arith.constant 0 : i32
    return %2, %c0_i32_0 : i32, i32
  }
  func.func @transform_1(%arg0: i32, %arg1: i32) -> (i32, i32) {
    %c0_i32 = arith.constant 0 : i32
    %c0_i32_0 = arith.constant 0 : i32
    return %arg0, %c0_i32 : i32, i32
  }
}

</mosaic_0001>

<llo_original>
// kernel: tpu_custom_call.1
$region0: #{tpu_custom_call.1}
  #allocation0 [shape = 'u32[]', space=smem, size = 0x4, offset = 0x4, fixed_abs, tag = 'smem constant byte address 0x4 - core index']
  #allocation1 [shape = 'u32[144,128]{1,0:T(1,128)}', space=vmem, size = 0x12000, scoped, tag = 'internal scratch']
  #allocation2 [shape = 'f32[1,1024]{1,0:T(1,128)}', space=vmem, size = 0x1000, scoped, tag = 'scratch operand']
  %s0 = inlined_call_operand.hbm [shape: f32[2,1024], index: 0, kind: input, shape index: {}]
  %s1 = inlined_call_operand.hbm [shape: f32[1,1], index: 1, kind: output, shape index: {}]
  %s2 = sld [smem:[#allocation0]]
  $region26: #{tpu_custom_call.1} parent=0
    _
  %s4 = ssub.s32 1, %s2
  %s5 = scalar_select 0, %s4, %s2
  $region1: #{tpu_custom_call.1} parent=0
    #allocation3 [shape = 'u8[8192]{0}', space=vmem, size = 0x2000, scoped, tag = 'input window, operand 0, single buffered']
    #allocation4 [shape = 's32[1]{0}', space=sflag, size = 0x4, scoped, tag = 'scoped memory for tpu_custom_call.1']
    #allocation5 [shape = 's32[1]{0}', space=sflag, size = 0x4, scoped, tag = 'scoped memory for tpu_custom_call.1']
    #allocation6 [shape = 'u8[512]{0}', space=smem, size = 0x200, scoped, tag = 'output window, operand 0, single buffered']
    %6 = vsyncpa [#allocation4], 0
    %7 = vsyncpa [#allocation5], 0
    // Predicated region
    $region2: #{tpu_custom_call.1} parent=1 // pred_check
      _
    $region3: #{tpu_custom_call.1} parent=1 // pred_check_branch
      %9 = sbr.rel (0) target = $region5
    $region4: #{tpu_custom_call.1} parent=1 // pred_region
      %s10 = sadd.s32 0, 0
      %p11 = scmp.lt.s32.totalorder %s10, 0
      %s12 = scalar_select %p11, %s10, 0
      %s14 = ssub.s32 256, 256
      %15 = vsyncadd [#allocation4], %s14
      %s16 = smul.addr %s12, 8
      %s17 = smul.addr %s16, 32
      %s18 = scalar_lea.hbm %s0, %s17
      %s20 = sshll.u32 [#allocation3], 4
      %s21 = int_to_ptr.vmem [resolvable:$true] %s20
      %23 = dma.hbm_to_vmem [thread:$0]  %s18, 256, %s21, [#allocation4]
    $region5: #{tpu_custom_call.1} parent=1 // pred_fallthru
      _
    // Predicated region
    $region6: #{tpu_custom_call.1} parent=1 // pred_check
      _
    $region7: #{tpu_custom_call.1} parent=1 // pred_check_branch
      %25 = sbr.rel (0) target = $region9
    $region8: #{tpu_custom_call.1} parent=1 // pred_region
      %26 = dma.done [#allocation4], 256
    $region9: #{tpu_custom_call.1} parent=1 // pred_fallthru
      _
    %s27 = sadd.s32 0, 0
    %p28 = scmp.lt.s32.totalorder %s27, 0
    %s29 = scalar_select %p28, %s27, 0
    %p30 = scmp.eq.s32.totalorder 0, 0
    // Predicated region
    $region10: #{tpu_custom_call.1} parent=1 // pred_check
      %p31 = pneg %p30
    $region11: #{tpu_custom_call.1} parent=1 // pred_check_branch
      %33 = sbr.rel (%p31) target = $region13
    $region12: #{tpu_custom_call.1} parent=1 // pred_region
      %34 = vst [vmem:[#allocation2] sm:$0xff] 0.0
    $region13: #{tpu_custom_call.1} parent=1 // pred_fallthru
      _
    %v35 = vld [vmem:[#allocation3] sm:$0xff]
    %v36 = vld [vmem:[#allocation3 + $0x8] sm:$0xff]
    %v37 = vadd.f32 %v35, 1e-12
    %v38 = vadd.f32 %v36, 1e-12
    %v39 = vlog2.pop %v37
    %v40 = vmul.f32 %v39, 0.6931472
    %v41 = vlog2.pop %v38
    %v42 = vmul.f32 %v41, 0.6931472
    %v43 = vmul.f32 %v35, %v40
    %v44 = vmul.f32 %v36, %v42
    %v45 = vld [vmem:[#allocation2] sm:$0xff]
    %v48 = vcombine.high %v43, %v43
    %v50 = vunpack.c.l.s4 1983009808
    %v51 = vunpack.c.0.s8 %v50
    %v52 = vlaneseq
    %v53 = vshrl.u32 %v52, 7
    %v54 = vsub.s32 %v51, %v53
    %v55 = vrot.slane %v43, %v54
    %v57 = vunpack.c.l.s4 1983009808
    %v58 = vunpack.c.0.s8 %v57
    %v59 = vlaneseq
    %v60 = vshrl.u32 %v59, 7
    %v61 = vsub.s32 %v58, %v60
    %v62 = vrot.slane %v48, %v61
    %v63 = vcombine.high %v55, %v55
    %v64 = vcombine.high %v62, %v62
    %v65 = vcombine.high %v44, %v44
    %v67 = vunpack.c.l.s4 1983009808
    %v68 = vunpack.c.0.s8 %v67
    %v69 = vlaneseq
    %v70 = vshrl.u32 %v69, 7
    %v71 = vsub.s32 %v68, %v70
    %v72 = vrot.slane %v44, %v71
    %v74 = vunpack.c.l.s4 1983009808
    %v75 = vunpack.c.0.s8 %v74
    %v76 = vlaneseq
    %v77 = vshrl.u32 %v76, 7
    %v78 = vsub.s32 %v75, %v77
    %v79 = vrot.slane %v65, %v78
    %v80 = vcombine.high %v72, %v72
    %v81 = vcombine.high %v79, %v79
    %vm90 = vcmask 1041408
    %v91 = vsel %vm90, %v55, 0.0
    %v92 = vrot.slane %v91, 4
    %v93 = vadd.f32 %v91, %v92
    %v94 = vrot.slane %v93, 2
    %v95 = vadd.f32 %v93, %v94
    %v96 = vrot.slane %v95, 1
    %v97 = vadd.f32 %v95, %v96
    %v98 = vsel %vm90, %v63, 0.0
    %v99 = vrot.slane %v98, 4
    %v100 = vadd.f32 %v98, %v99
    %v101 = vrot.slane %v100, 2
    %v102 = vadd.f32 %v100, %v101
    %v103 = vrot.slane %v102, 1
    %v104 = vadd.f32 %v102, %v103
    %v105 = vsel %vm90, %v62, 0.0
    %v106 = vrot.slane %v105, 4
    %v107 = vadd.f32 %v105, %v106
    %v108 = vrot.slane %v107, 2
    %v109 = vadd.f32 %v107, %v108
    %v110 = vrot.slane %v109, 1
    %v111 = vadd.f32 %v109, %v110
    %v112 = vsel %vm90, %v64, 0.0
    %v113 = vrot.slane %v112, 4
    %v114 = vadd.f32 %v112, %v113
    %v115 = vrot.slane %v114, 2
    %v116 = vadd.f32 %v114, %v115
    %v117 = vrot.slane %v116, 1
    %v118 = vadd.f32 %v116, %v117
    %v119 = vsel %vm90, %v72, 0.0
    %v120 = vrot.slane %v119, 4
    %v121 = vadd.f32 %v119, %v120
    %v122 = vrot.slane %v121, 2
    %v123 = vadd.f32 %v121, %v122
    %v124 = vrot.slane %v123, 1
    %v125 = vadd.f32 %v123, %v124
    %v126 = vsel %vm90, %v80, 0.0
    %v127 = vrot.slane %v126, 4
    %v128 = vadd.f32 %v126, %v127
    %v129 = vrot.slane %v128, 2
    %v130 = vadd.f32 %v128, %v129
    %v131 = vrot.slane %v130, 1
    %v132 = vadd.f32 %v130, %v131
    %v133 = vsel %vm90, %v79, 0.0
    %v134 = vrot.slane %v133, 4
    %v135 = vadd.f32 %v133, %v134
    %v136 = vrot.slane %v135, 2
    %v137 = vadd.f32 %v135, %v136
    %v138 = vrot.slane %v137, 1
    %v139 = vadd.f32 %v137, %v138
    %v140 = vsel %vm90, %v81, 0.0
    %v141 = vrot.slane %v140, 4
    %v142 = vadd.f32 %v140, %v141
    %v143 = vrot.slane %v142, 2
    %v144 = vadd.f32 %v142, %v143
    %v145 = vrot.slane %v144, 1
    %v146 = vadd.f32 %v144, %v145
    %v155 = vcombine.low %v97, %v104
    %v156 = vcombine.low %v111, %v118
    %v157 = vcombine.low %v125, %v132
    %v158 = vcombine.low %v139, %v146
    %v160 = vunpack.c.l.s4 1966171168
    %v161 = vunpack.c.0.s8 %v160
    %v162 = vlaneseq
    %v163 = vshrl.u32 %v162, 7
    %v164 = vsub.s32 %v161, %v163
    %v165 = vrot.slane %v155, %v164
    %v167 = vunpack.c.l.s4 1966171168
    %v168 = vunpack.c.0.s8 %v167
    %v169 = vlaneseq
    %v170 = vshrl.u32 %v169, 7
    %v171 = vsub.s32 %v168, %v170
    %v172 = vrot.slane %v156, %v171
    %v174 = vunpack.c.l.s4 1966171168
    %v175 = vunpack.c.0.s8 %v174
    %v176 = vlaneseq
    %v177 = vshrl.u32 %v176, 7
    %v178 = vsub.s32 %v175, %v177
    %v179 = vrot.slane %v157, %v178
    %v181 = vunpack.c.l.s4 1966171168
    %v182 = vunpack.c.0.s8 %v181
    %v183 = vlaneseq
    %v184 = vshrl.u32 %v183, 7
    %v185 = vsub.s32 %v182, %v184
    %v186 = vrot.slane %v158, %v185
    %v187 = vcombine.low %v165, %v172
    %v188 = vcombine.low %v179, %v186
    %v190 = vunpack.c.l.s4 1966171168
    %v191 = vunpack.c.0.s8 %v190
    %v192 = vlaneseq
    %v193 = vshrl.u32 %v192, 7
    %v194 = vsub.s32 %v191, %v193
    %v195 = vrot.slane %v187, %v194
    %v197 = vunpack.c.l.s4 1966171168
    %v198 = vunpack.c.0.s8 %v197
    %v199 = vlaneseq
    %v200 = vshrl.u32 %v199, 7
    %v201 = vsub.s32 %v198, %v200
    %v202 = vrot.slane %v188, %v201
    %v203 = vcombine.low %v195, %v202
    %v205 = vadd.f32 %v45, %v203
    %206 = vst [vmem:[#allocation2] sm:$0xff] %v205
    // Predicated region
    $region14: #{tpu_custom_call.1} parent=1 // pred_check
      %p207 = pneg %p30
    $region15: #{tpu_custom_call.1} parent=1 // pred_check_branch
      %209 = sbr.rel (%p207) target = $region17
    $region16: #{tpu_custom_call.1} parent=1 // pred_region
      %v210 = vld [vmem:[#allocation2] sm:$0xff]
      %v212 = vlaneseq
      %v213 = vshrl.u32 %v212, 7
      %v214 = vsub.s32 0, %v213
      %v215 = vrot.slane %v210, %v214
      %v216 = vlaneseq
      %v217 = vshrl.u32 %v216, 7
      %v218 = vsub.s32 1, %v217
      %v219 = vrot.slane %v210, %v218
      %v220 = vlaneseq
      %v221 = vshrl.u32 %v220, 7
      %v222 = vsub.s32 2, %v221
      %v223 = vrot.slane %v210, %v222
      %v224 = vlaneseq
      %v225 = vshrl.u32 %v224, 7
      %v226 = vsub.s32 3, %v225
      %v227 = vrot.slane %v210, %v226
      %v228 = vlaneseq
      %v229 = vshrl.u32 %v228, 7
      %v230 = vsub.s32 4, %v229
      %v231 = vrot.slane %v210, %v230
      %v232 = vlaneseq
      %v233 = vshrl.u32 %v232, 7
      %v234 = vsub.s32 5, %v233
      %v235 = vrot.slane %v210, %v234
      %v236 = vlaneseq
      %v237 = vshrl.u32 %v236, 7
      %v238 = vsub.s32 6, %v237
      %v239 = vrot.slane %v210, %v238
      %v240 = vlaneseq
      %v241 = vshrl.u32 %v240, 7
      %v242 = vsub.s32 7, %v241
      %v243 = vrot.slane %v210, %v242
      %vm252 = vcmask 1040384
      %v253 = vsel %vm252, %v215, 0.0
      %v254 = vsel %vm252, %v219, 0.0
      %v255 = vadd.f32 %v253, %v254
      %v256 = vsel %vm252, %v223, 0.0
      %v257 = vadd.f32 %v255, %v256
      %v258 = vsel %vm252, %v227, 0.0
      %v259 = vadd.f32 %v257, %v258
      %v260 = vsel %vm252, %v231, 0.0
      %v261 = vadd.f32 %v259, %v260
      %v262 = vsel %vm252, %v235, 0.0
      %v263 = vadd.f32 %v261, %v262
      %v264 = vsel %vm252, %v239, 0.0
      %v265 = vadd.f32 %v263, %v264
      %v266 = vsel %vm252, %v243, 0.0
      %v267 = vadd.f32 %v265, %v266
      %268 = vadd.xlane.f32.xlu0 %v267
      %v269 = vpop.xlane.xlu0 %268
      %v270 = vrot.slane %v269, 4
      %v271 = vadd.f32 %v269, %v270
      %v272 = vrot.slane %v271, 2
      %v273 = vadd.f32 %v271, %v272
      %v274 = vrot.slane %v273, 1
      %v275 = vadd.f32 %v273, %v274
      %s276 = vtos %v275
      %s277 = scalar_lea.smem [#allocation6], 0
      %278 = sst [smem:[%s277]] %s276
    $region17: #{tpu_custom_call.1} parent=1 // pred_fallthru
      _
    // Predicated region
    $region18: #{tpu_custom_call.1} parent=1 // pred_check
      _
    $region19: #{tpu_custom_call.1} parent=1 // pred_check_branch
      %280 = sbr.rel (0) target = $region21
    $region20: #{tpu_custom_call.1} parent=1 // pred_region
      %s282 = ssub.s32 16, 16
      %283 = vsyncadd [#allocation5], %s282
      %286 = dma.smem_to_hbm [#allocation6], 16, %s1, [#allocation5]
    $region21: #{tpu_custom_call.1} parent=1 // pred_fallthru
      _
    // Predicated region
    $region22: #{tpu_custom_call.1} parent=1 // pred_check
      _
    $region23: #{tpu_custom_call.1} parent=1 // pred_check_branch
      %288 = sbr.rel (0) target = $region25
    $region24: #{tpu_custom_call.1} parent=1 // pred_region
      %289 = dma.done [#allocation5], 16
    $region25: #{tpu_custom_call.1} parent=1 // pred_fallthru
      _
    %290 = sfence
    %291 = vsyncpa [#allocation4], 1
    %292 = vsyncpa [#allocation5], 1

</llo_original>
